<compile_context>
chip_gen: v7x
topology: tpu7x:2x2x1
jax: 0.10.0
libtpu: 0.0.40
codegen_flags: <defaults>
</compile_context>

<pallas_src>
import functools

import jax
import jax.numpy as jnp
from jax.experimental import pallas as pl
from jax.experimental.pallas import tpu as pltpu

LAYER_SIZES = (784, 100, 100, 10)
PADDED_WIDTH = 128  # lane-dense width for hidden / output features


def _round_up(x, m):
    return (x + m - 1) // m * m


def _cdiv(a, b):
    return (a + b - 1) // b


def _mlp_kernel(x_ref, w1_ref, b1_ref, w2_ref, b2_ref, w3_ref, b3_ref, out_ref):
    """Fused MLP forward: (Linear + ReLU) x2 -> Linear.

    x arrives as f32 (straight from HBM, no pre-pass) and is cast to bf16 here;
    weights are bf16, biases f32, MXU accumulation f32.  All feature dims are
    padded to 128 so every vreg is lane-dense and the output store is an
    unmasked full-lane vst.  ReLU is applied on the f32 accumulator before the
    bf16 cast (v5e VPU has no bf16 ALUs).
    """
    x = x_ref[...].astype(jnp.bfloat16)  # [tile, 784] f32 -> bf16 (hidden under DMA)

    h = jnp.dot(x, w1_ref[...], preferred_element_type=jnp.float32) + b1_ref[...]
    h = jnp.maximum(h, 0.0).astype(jnp.bfloat16)  # ReLU in f32, then bf16 for next MXU pass

    h = jnp.dot(h, w2_ref[...], preferred_element_type=jnp.float32) + b2_ref[...]
    h = jnp.maximum(h, 0.0).astype(jnp.bfloat16)  # ReLU

    logits = jnp.dot(h, w3_ref[...], preferred_element_type=jnp.float32) + b3_ref[...]
    out_ref[...] = logits.astype(out_ref.dtype)  # [tile, 128] bf16, lane-dense store


@functools.partial(jax.jit, static_argnames=("batch_tile",))
def mnist_mlp_forward(x_nchw, params, batch_tile=1024):
    """Forward pass of MNISTModel.

    x_nchw: [B, 1, 28, 28] float32 (NCHW, like PyTorch).
    params: dict with w1 [784,100], b1 [1,100], w2 [100,100], b2 [1,100],
            w3 [100,10], b3 [1,10] (all float32).
    Returns logits [B, 10] float32.
    """
    B = x_nchw.shape[0]
    d_in, n_h1, n_h2, d_out = LAYER_SIZES
    H = PADDED_WIDTH

    # nn.Flatten(): [B, 1, 28, 28] -> [B, 784].  Contiguous reshape: no HBM copy,
    # no dtype cast here (the kernel casts to bf16 in VMEM).
    x = x_nchw.reshape(B, d_in)

    # Effective batch tile: large for throughput, multiple of 8 (f32 sublane pack),
    # shrunk for small batches.  No batch padding: grid = cdiv(B, tile) and Pallas
    # masks the partial last tile's output store.
    eff_tile = min(batch_tile, _round_up(B, 8))
    # Give both TensorCores (v7x) at least one tile when the batch allows it.
    if _cdiv(B, eff_tile) < 2 and B > 8:
        eff_tile = _round_up(_cdiv(B, 2), 8)
    grid = (_cdiv(B, eff_tile),)

    # Zero-pad hidden/output feature dims to 128 (lane-dense).  Padded rows/cols are
    # zero, so numerics are unchanged; weights bf16, biases kept in f32.  These are
    # tiny (<0.3 MB total) and stay resident in VMEM across all batch tiles.
    w1 = jnp.pad(params["w1"], ((0, 0), (0, H - n_h1))).astype(jnp.bfloat16)
    b1 = jnp.pad(params["b1"], ((0, 0), (0, H - n_h1))).astype(jnp.float32)
    w2 = jnp.pad(params["w2"], ((0, H - n_h1), (0, H - n_h2))).astype(jnp.bfloat16)
    b2 = jnp.pad(params["b2"], ((0, 0), (0, H - n_h2))).astype(jnp.float32)
    w3 = jnp.pad(params["w3"], ((0, H - n_h2), (0, H - d_out))).astype(jnp.bfloat16)
    b3 = jnp.pad(params["b3"], ((0, 0), (0, H - d_out))).astype(jnp.float32)

    def full2d(shape):
        return pl.BlockSpec(shape, lambda i: (0, 0))

    out = pl.pallas_call(
        _mlp_kernel,
        out_shape=jax.ShapeDtypeStruct((B, H), jnp.bfloat16),
        grid_spec=pltpu.PrefetchScalarGridSpec(
            num_scalar_prefetch=0,
            grid=grid,
            in_specs=[
                pl.BlockSpec((eff_tile, d_in), lambda i: (i, 0)),  # x tile (f32)
                full2d((d_in, H)),  # w1
                full2d((1, H)),     # b1
                full2d((H, H)),     # w2
                full2d((1, H)),     # b2
                full2d((H, H)),     # w3
                full2d((1, H)),     # b3
            ],
            out_specs=pl.BlockSpec((eff_tile, H), lambda i: (i, 0)),
        ),
        compiler_params=pltpu.CompilerParams(
            # Batch axis is embarrassingly parallel -> shards across the 2 TCs on v7x.
            dimension_semantics=("parallel",),
        ),
    )(x, w1, b1, w2, b2, w3, b3)

    # Slice the 10 real lanes and restore the module's f32 output dtype.  This is a
    # tiny fused pass (B x 10 elements); ideally the consumer fuses it further.
    return out[:, :d_out].astype(jnp.float32)


def init_params(key, layer_sizes=LAYER_SIZES):
    """Deterministic init mimicking PyTorch nn.Linear default (U[-1/sqrt(fan_in), +1/sqrt(fan_in)])."""
    params = {}
    ks = jax.random.split(key, 2 * (len(layer_sizes) - 1))
    for idx, (n_in, n_out) in enumerate(zip(layer_sizes[:-1], layer_sizes[1:])):
        bound = 1.0 / jnp.sqrt(jnp.float32(n_in))
        w = jax.random.uniform(ks[2 * idx], (n_in, n_out), jnp.float32, -bound, bound)
        b = jax.random.uniform(ks[2 * idx + 1], (1, n_out), jnp.float32, -bound, bound)
        params[f"w{idx + 1}"] = w
        params[f"b{idx + 1}"] = b
    return params


def _reference_forward_f32(x_nchw, params):
    """Pure-f32 JAX reference (matches the PyTorch module exactly)."""
    x = x_nchw.reshape(x_nchw.shape[0], -1).astype(jnp.float32)
    h = jnp.maximum(x @ params["w1"] + params["b1"], 0.0)
    h = jnp.maximum(h @ params["w2"] + params["b2"], 0.0)
    return h @ params["w3"] + params["b3"]


def _reference_forward_bf16(x_nchw, params):
    """Reference mirroring the kernel's bf16 quantization (f32 accumulation, bf16 output)."""
    x = x_nchw.reshape(x_nchw.shape[0], -1).astype(jnp.bfloat16)
    w1 = params["w1"].astype(jnp.bfloat16)
    w2 = params["w2"].astype(jnp.bfloat16)
    w3 = params["w3"].astype(jnp.bfloat16)
    h = jnp.dot(x, w1, preferred_element_type=jnp.float32) + params["b1"]
    h = jnp.maximum(h, 0.0).astype(jnp.bfloat16)
    h = jnp.dot(h, w2, preferred_element_type=jnp.float32) + params["b2"]
    h = jnp.maximum(h, 0.0).astype(jnp.bfloat16)
    out = jnp.dot(h, w3, preferred_element_type=jnp.float32) + params["b3"]
    return out.astype(jnp.bfloat16).astype(jnp.float32)  # mirror the bf16 output store


if __name__ == "__main__":
    key = jax.random.PRNGKey(0)
    k_param, k_x1, k_x2 = jax.random.split(key, 3)

    params = init_params(k_param)

    # Main test: small MNIST-shaped batch (NCHW like PyTorch): [32, 1, 28, 28]
    x = jax.random.normal(k_x1, (32, 1, 28, 28), dtype=jnp.float32)
    logits = jax.block_until_ready(mnist_mlp_forward(x, params))
    assert logits.shape == (32, 10)
    assert jnp.allclose(logits, _reference_forward_bf16(x, params), atol=5e-3, rtol=5e-3), \
        "mismatch vs bf16-quantized reference"
    assert jnp.allclose(logits, _reference_forward_f32(x, params), atol=5e-2, rtol=5e-2), \
        "mismatch vs f32 reference"

    # Second test: batch not a multiple of the tile -> exercises the masked partial
    # last tile (no batch padding is materialized).
    x2 = jax.random.normal(k_x2, (50, 1, 28, 28), dtype=jnp.float32)
    logits2 = jax.block_until_ready(mnist_mlp_forward(x2, params))
    assert logits2.shape == (50, 10)
    assert jnp.allclose(logits2, _reference_forward_bf16(x2, params), atol=5e-3, rtol=5e-3), \
        "mismatch vs bf16-quantized reference (partial tile)"

    print("KERNEL_OK")
</pallas_src>

<mosaic_0001>
module attributes {stable_mosaic.version = 11 : i64} {
  func.func @_mlp_kernel(%arg0: i32, %arg1: memref<16x784xf32, #tpu.memory_space<vmem>>, %arg2: memref<784x128xbf16, #tpu.memory_space<vmem>>, %arg3: memref<1x128xf32, #tpu.memory_space<vmem>>, %arg4: memref<128x128xbf16, #tpu.memory_space<vmem>>, %arg5: memref<1x128xf32, #tpu.memory_space<vmem>>, %arg6: memref<128x128xbf16, #tpu.memory_space<vmem>>, %arg7: memref<1x128xf32, #tpu.memory_space<vmem>>, %arg8: memref<16x128xbf16, #tpu.memory_space<vmem>>) attributes {dimension_semantics = [#tpu.dimension_semantics<parallel>], iteration_bounds = array<i64: 2>, scalar_prefetch = 0 : i64, scratch_operands = 0 : i64, tpu.core_type = #tpu.core_type<tc>, window_params = [{transform_indices = @transform_0, window_bounds = array<i64: 16, 784>}, {pipeline_mode = #tpu.pipeline_mode<synchronous>, transform_indices = @transform_1, window_bounds = array<i64: 784, 128>}, {pipeline_mode = #tpu.pipeline_mode<synchronous>, transform_indices = @transform_2, window_bounds = array<i64: 1, 128>}, {pipeline_mode = #tpu.pipeline_mode<synchronous>, transform_indices = @transform_3, window_bounds = array<i64: 128, 128>}, {pipeline_mode = #tpu.pipeline_mode<synchronous>, transform_indices = @transform_4, window_bounds = array<i64: 1, 128>}, {pipeline_mode = #tpu.pipeline_mode<synchronous>, transform_indices = @transform_5, window_bounds = array<i64: 128, 128>}, {pipeline_mode = #tpu.pipeline_mode<synchronous>, transform_indices = @transform_6, window_bounds = array<i64: 1, 128>}, {transform_indices = @transform_7, window_bounds = array<i64: 16, 128>}]} {
    %c0 = arith.constant 0 : index
    %c0_0 = arith.constant 0 : index
    %0 = vector.load %arg1[%c0, %c0_0] : memref<16x784xf32, #tpu.memory_space<vmem>>, vector<16x784xf32>
    %1 = arith.truncf %0 : vector<16x784xf32> to vector<16x784xbf16>
    %c0_1 = arith.constant 0 : index
    %c0_2 = arith.constant 0 : index
    %2 = vector.load %arg2[%c0_1, %c0_2] : memref<784x128xbf16, #tpu.memory_space<vmem>>, vector<784x128xbf16>
    %cst = arith.constant dense<0.000000e+00> : vector<16x128xf32>
    %3 = tpu.matmul %1, %2, %cst {dimension_numbers = #tpu.dot_dimension_numbers<[1], [0], [0], [1], [0, 0, 1, 1], [], []>} : vector<16x784xbf16>, vector<784x128xbf16>, vector<16x128xf32> -> vector<16x128xf32>
    %c0_3 = arith.constant 0 : index
    %c0_4 = arith.constant 0 : index
    %4 = vector.load %arg3[%c0_3, %c0_4] : memref<1x128xf32, #tpu.memory_space<vmem>>, vector<1x128xf32>
    %5 = vector.broadcast %4 : vector<1x128xf32> to vector<16x128xf32>
    %6 = arith.addf %3, %5 : vector<16x128xf32>
    %cst_5 = arith.constant 0.000000e+00 : f32
    %7 = vector.broadcast %cst_5 : f32 to vector<16x128xf32>
    %8 = arith.maximumf %6, %7 : vector<16x128xf32>
    %9 = arith.truncf %8 : vector<16x128xf32> to vector<16x128xbf16>
    %c0_6 = arith.constant 0 : index
    %c0_7 = arith.constant 0 : index
    %10 = vector.load %arg4[%c0_6, %c0_7] : memref<128x128xbf16, #tpu.memory_space<vmem>>, vector<128x128xbf16>
    %cst_8 = arith.constant dense<0.000000e+00> : vector<16x128xf32>
    %11 = tpu.matmul %9, %10, %cst_8 {dimension_numbers = #tpu.dot_dimension_numbers<[1], [0], [0], [1], [0, 0, 1, 1], [], []>} : vector<16x128xbf16>, vector<128x128xbf16>, vector<16x128xf32> -> vector<16x128xf32>
    %c0_9 = arith.constant 0 : index
    %c0_10 = arith.constant 0 : index
    %12 = vector.load %arg5[%c0_9, %c0_10] : memref<1x128xf32, #tpu.memory_space<vmem>>, vector<1x128xf32>
    %13 = vector.broadcast %12 : vector<1x128xf32> to vector<16x128xf32>
    %14 = arith.addf %11, %13 : vector<16x128xf32>
    %cst_11 = arith.constant 0.000000e+00 : f32
    %15 = vector.broadcast %cst_11 : f32 to vector<16x128xf32>
    %16 = arith.maximumf %14, %15 : vector<16x128xf32>
    %17 = arith.truncf %16 : vector<16x128xf32> to vector<16x128xbf16>
    %c0_12 = arith.constant 0 : index
    %c0_13 = arith.constant 0 : index
    %18 = vector.load %arg6[%c0_12, %c0_13] : memref<128x128xbf16, #tpu.memory_space<vmem>>, vector<128x128xbf16>
    %cst_14 = arith.constant dense<0.000000e+00> : vector<16x128xf32>
    %19 = tpu.matmul %17, %18, %cst_14 {dimension_numbers = #tpu.dot_dimension_numbers<[1], [0], [0], [1], [0, 0, 1, 1], [], []>} : vector<16x128xbf16>, vector<128x128xbf16>, vector<16x128xf32> -> vector<16x128xf32>
    %c0_15 = arith.constant 0 : index
    %c0_16 = arith.constant 0 : index
    %20 = vector.load %arg7[%c0_15, %c0_16] : memref<1x128xf32, #tpu.memory_space<vmem>>, vector<1x128xf32>
    %21 = vector.broadcast %20 : vector<1x128xf32> to vector<16x128xf32>
    %22 = arith.addf %19, %21 : vector<16x128xf32>
    %23 = arith.truncf %22 : vector<16x128xf32> to vector<16x128xbf16>
    %c0_17 = arith.constant 0 : index
    %c0_18 = arith.constant 0 : index
    %24 = vector.load %arg8[%c0_17, %c0_18] : memref<16x128xbf16, #tpu.memory_space<vmem>>, vector<16x128xbf16>
    tpu.vector_store %arg8[%c0_17, %c0_18], %23 {strides = array<i32>} : memref<16x128xbf16, #tpu.memory_space<vmem>>, vector<16x128xbf16>,
    return
  }
  func.func @transform_0(%arg0: i32) -> (i32, i32) {
    %c0_i32 = arith.constant 0 : i32
    %c0_i32_0 = arith.constant 0 : i32
    return %arg0, %c0_i32 : i32, i32
  }
  func.func @transform_1(%arg0: i32) -> (i32, i32) {
    %c0_i32 = arith.constant 0 : i32
    %c0_i32_0 = arith.constant 0 : i32
    %c0_i32_1 = arith.constant 0 : i32
    return %c0_i32, %c0_i32_0 : i32, i32
  }
  func.func @transform_2(%arg0: i32) -> (i32, i32) {
    %c0_i32 = arith.constant 0 : i32
    %c0_i32_0 = arith.constant 0 : i32
    %c0_i32_1 = arith.constant 0 : i32
    return %c0_i32, %c0_i32_0 : i32, i32
  }
  func.func @transform_3(%arg0: i32) -> (i32, i32) {
    %c0_i32 = arith.constant 0 : i32
    %c0_i32_0 = arith.constant 0 : i32
    %c0_i32_1 = arith.constant 0 : i32
    return %c0_i32, %c0_i32_0 : i32, i32
  }
  func.func @transform_4(%arg0: i32) -> (i32, i32) {
    %c0_i32 = arith.constant 0 : i32
    %c0_i32_0 = arith.constant 0 : i32
    %c0_i32_1 = arith.constant 0 : i32
    return %c0_i32, %c0_i32_0 : i32, i32
  }
  func.func @transform_5(%arg0: i32) -> (i32, i32) {
    %c0_i32 = arith.constant 0 : i32
    %c0_i32_0 = arith.constant 0 : i32
    %c0_i32_1 = arith.constant 0 : i32
    return %c0_i32, %c0_i32_0 : i32, i32
  }
  func.func @transform_6(%arg0: i32) -> (i32, i32) {
    %c0_i32 = arith.constant 0 : i32
    %c0_i32_0 = arith.constant 0 : i32
    %c0_i32_1 = arith.constant 0 : i32
    return %c0_i32, %c0_i32_0 : i32, i32
  }
  func.func @transform_7(%arg0: i32) -> (i32, i32) {
    %c0_i32 = arith.constant 0 : i32
    %c0_i32_0 = arith.constant 0 : i32
    return %arg0, %c0_i32 : i32, i32
  }
}

</mosaic_0001>

<llo_original>
// kernel: mnist_mlp_forward.1
$region0: #{mnist_mlp_forward.1}
  #allocation0 [shape = 'u32[]', space=smem, size = 0x4, offset = 0x4, fixed_abs, tag = 'smem constant byte address 0x4 - core index']
  #allocation1 [shape = 'u32[144,128]{1,0:T(1,128)}', space=vmem, size = 0x12000, scoped, tag = 'internal scratch']
  %s0 = inlined_call_operand.vmem [shape: f32[32,784], index: 0, kind: input, shape index: {}]
  %s1 = inlined_call_operand.vmem [shape: bf16[784,128], index: 1, kind: input, shape index: {}]
  %s2 = inlined_call_operand.vmem [shape: f32[1,128], index: 2, kind: input, shape index: {}]
  %s3 = inlined_call_operand.vmem [shape: bf16[128,128], index: 3, kind: input, shape index: {}]
  %s4 = inlined_call_operand.vmem [shape: f32[1,128], index: 4, kind: input, shape index: {}]
  %s5 = inlined_call_operand.vmem [shape: bf16[128,128], index: 5, kind: input, shape index: {}]
  %s6 = inlined_call_operand.vmem [shape: f32[1,128], index: 6, kind: input, shape index: {}]
  %s7 = inlined_call_operand.vmem [shape: bf16[32,128], index: 7, kind: output, shape index: {}]
  %s8 = sld [smem:[#allocation0]]
  $region61: #{mnist_mlp_forward.1} parent=0
    _
  %s10 = ssub.s32 1, %s8
  %s11 = scalar_select 0, %s10, %s8
  loop: start=0, step=1, limit=4
  $region2: #{mnist_mlp_forward.1} parent=0 // loop_pre_header
    _
  $region3: #{mnist_mlp_forward.1} parent=0 // loop_header
    %s13 = sphi 0, %s17
    %p14 = scmp.ge.s32.totalorder %s13, 4
    %s23 = sphi 0, %s25
    %s26 = sphi 0, %s23
    %s27 = sphi 0, %s26
    %s43 = sphi 0, %s27
    %s47 = sphi 0, %s47
    %s49 = sphi 0, %s47
    %s50 = sphi 0, %s49
    %s64 = sphi 0, %s50
    %s68 = sphi 0, %s68
    %s70 = sphi 0, %s68
    %s71 = sphi 0, %s70
    %s85 = sphi 0, %s71
    %s89 = sphi 0, %s89
    %s91 = sphi 0, %s89
    %s92 = sphi 0, %s91
    %s106 = sphi 0, %s92
    %s110 = sphi 0, %s110
    %s112 = sphi 0, %s110
    %s113 = sphi 0, %s112
    %s127 = sphi 0, %s113
    %s131 = sphi 0, %s131
    %s133 = sphi 0, %s131
    %s134 = sphi 0, %s133
    %s148 = sphi 0, %s134
    %s152 = sphi 0, %s152
    %s154 = sphi 0, %s152
    %s155 = sphi 0, %s154
    %s169 = sphi 0, %s155
    %s175 = sphi 0, %s177
    %s178 = sphi 0, %s175
    %s179 = sphi 0, %s178
    %s195 = sphi 0, %s179
  $region4: #{mnist_mlp_forward.1} parent=0 // loop_header_branch
    %16 = sbr.rel (%p14) target = $region8
  $region5: #{mnist_mlp_forward.1} parent=0 // loop_body
    %s18 = ssub.s32 %s13, 1
    %s19 = ssub.s32 %s13, 2
    %s20 = sadd.s32 %s13, 1
    %s21 = ssub.s32 %s13, %s20
    %p22 = scmp.eq.s32.totalorder %s21, 0
    %s24 = sadd.s32 %s23, 1
    %s25 = scalar_select %p22, %s23, %s24
    %p28 = pneg %p22
    %p29 = scmp.eq.s32.totalorder %s13, 1
    %p30 = por %p28, %p29
    %p31 = scmp.ne.s32.totalorder %s23, %s26
    %p32 = scmp.eq.s32.totalorder %s13, 0
    %p33 = por %p31, %p32
    %p34 = scmp.ne.s32.totalorder %s23, %s26
    %p35 = scmp.eq.s32.totalorder %s18, 1
    %p36 = por %p34, %p35
    %p37 = scmp.ne.s32.totalorder %s26, %s27
    %p38 = scmp.eq.s32.totalorder %s18, 0
    %p39 = por %p37, %p38
    %p40 = scmp.ne.s32.totalorder %s26, %s27
    %p41 = scmp.eq.s32.totalorder %s19, 1
    %p42 = por %p40, %p41
    %p44 = scmp.ne.s32.totalorder %s27, %s43
    %p45 = scmp.eq.s32.totalorder %s19, 0
    %p46 = por %p44, %p45
    %s48 = sadd.s32 %s47, 1
    %p51 = scmp.eq.s32.totalorder %s13, 1
    %p52 = scmp.ne.s32.totalorder %s47, %s49
    %p53 = scmp.eq.s32.totalorder %s13, 0
    %p54 = por %p52, %p53
    %p55 = scmp.ne.s32.totalorder %s47, %s49
    %p56 = scmp.eq.s32.totalorder %s18, 1
    %p57 = por %p55, %p56
    %p58 = scmp.ne.s32.totalorder %s49, %s50
    %p59 = scmp.eq.s32.totalorder %s18, 0
    %p60 = por %p58, %p59
    %p61 = scmp.ne.s32.totalorder %s49, %s50
    %p62 = scmp.eq.s32.totalorder %s19, 1
    %p63 = por %p61, %p62
    %p65 = scmp.ne.s32.totalorder %s50, %s64
    %p66 = scmp.eq.s32.totalorder %s19, 0
    %p67 = por %p65, %p66
    %s69 = sadd.s32 %s68, 1
    %p72 = scmp.eq.s32.totalorder %s13, 1
    %p73 = scmp.ne.s32.totalorder %s68, %s70
    %p74 = scmp.eq.s32.totalorder %s13, 0
    %p75 = por %p73, %p74
    %p76 = scmp.ne.s32.totalorder %s68, %s70
    %p77 = scmp.eq.s32.totalorder %s18, 1
    %p78 = por %p76, %p77
    %p79 = scmp.ne.s32.totalorder %s70, %s71
    %p80 = scmp.eq.s32.totalorder %s18, 0
    %p81 = por %p79, %p80
    %p82 = scmp.ne.s32.totalorder %s70, %s71
    %p83 = scmp.eq.s32.totalorder %s19, 1
    %p84 = por %p82, %p83
    %p86 = scmp.ne.s32.totalorder %s71, %s85
    %p87 = scmp.eq.s32.totalorder %s19, 0
    %p88 = por %p86, %p87
    %s90 = sadd.s32 %s89, 1
    %p93 = scmp.eq.s32.totalorder %s13, 1
    %p94 = scmp.ne.s32.totalorder %s89, %s91
    %p95 = scmp.eq.s32.totalorder %s13, 0
    %p96 = por %p94, %p95
    %p97 = scmp.ne.s32.totalorder %s89, %s91
    %p98 = scmp.eq.s32.totalorder %s18, 1
    %p99 = por %p97, %p98
    %p100 = scmp.ne.s32.totalorder %s91, %s92
    %p101 = scmp.eq.s32.totalorder %s18, 0
    %p102 = por %p100, %p101
    %p103 = scmp.ne.s32.totalorder %s91, %s92
    %p104 = scmp.eq.s32.totalorder %s19, 1
    %p105 = por %p103, %p104
    %p107 = scmp.ne.s32.totalorder %s92, %s106
    %p108 = scmp.eq.s32.totalorder %s19, 0
    %p109 = por %p107, %p108
    %s111 = sadd.s32 %s110, 1
    %p114 = scmp.eq.s32.totalorder %s13, 1
    %p115 = scmp.ne.s32.totalorder %s110, %s112
    %p116 = scmp.eq.s32.totalorder %s13, 0
    %p117 = por %p115, %p116
    %p118 = scmp.ne.s32.totalorder %s110, %s112
    %p119 = scmp.eq.s32.totalorder %s18, 1
    %p120 = por %p118, %p119
    %p121 = scmp.ne.s32.totalorder %s112, %s113
    %p122 = scmp.eq.s32.totalorder %s18, 0
    %p123 = por %p121, %p122
    %p124 = scmp.ne.s32.totalorder %s112, %s113
    %p125 = scmp.eq.s32.totalorder %s19, 1
    %p126 = por %p124, %p125
    %p128 = scmp.ne.s32.totalorder %s113, %s127
    %p129 = scmp.eq.s32.totalorder %s19, 0
    %p130 = por %p128, %p129
    %s132 = sadd.s32 %s131, 1
    %p135 = scmp.eq.s32.totalorder %s13, 1
    %p136 = scmp.ne.s32.totalorder %s131, %s133
    %p137 = scmp.eq.s32.totalorder %s13, 0
    %p138 = por %p136, %p137
    %p139 = scmp.ne.s32.totalorder %s131, %s133
    %p140 = scmp.eq.s32.totalorder %s18, 1
    %p141 = por %p139, %p140
    %p142 = scmp.ne.s32.totalorder %s133, %s134
    %p143 = scmp.eq.s32.totalorder %s18, 0
    %p144 = por %p142, %p143
    %p145 = scmp.ne.s32.totalorder %s133, %s134
    %p146 = scmp.eq.s32.totalorder %s19, 1
    %p147 = por %p145, %p146
    %p149 = scmp.ne.s32.totalorder %s134, %s148
    %p150 = scmp.eq.s32.totalorder %s19, 0
    %p151 = por %p149, %p150
    %s153 = sadd.s32 %s152, 1
    %p156 = scmp.eq.s32.totalorder %s13, 1
    %p157 = scmp.ne.s32.totalorder %s152, %s154
    %p158 = scmp.eq.s32.totalorder %s13, 0
    %p159 = por %p157, %p158
    %p160 = scmp.ne.s32.totalorder %s152, %s154
    %p161 = scmp.eq.s32.totalorder %s18, 1
    %p162 = por %p160, %p161
    %p163 = scmp.ne.s32.totalorder %s154, %s155
    %p164 = scmp.eq.s32.totalorder %s18, 0
    %p165 = por %p163, %p164
    %p166 = scmp.ne.s32.totalorder %s154, %s155
    %p167 = scmp.eq.s32.totalorder %s19, 1
    %p168 = por %p166, %p167
    %p170 = scmp.ne.s32.totalorder %s155, %s169
    %p171 = scmp.eq.s32.totalorder %s19, 0
    %p172 = por %p170, %p171
    %s173 = ssub.s32 %s13, %s20
    %p174 = scmp.eq.s32.totalorder %s173, 0
    %s176 = sadd.s32 %s175, 1
    %s177 = scalar_select %p174, %s175, %s176
    %p180 = pneg %p174
    %p181 = scmp.eq.s32.totalorder %s13, 1
    %p182 = por %p180, %p181
    %p183 = scmp.ne.s32.totalorder %s175, %s178
    %p184 = scmp.eq.s32.totalorder %s13, 0
    %p185 = por %p183, %p184
    %p186 = scmp.ne.s32.totalorder %s175, %s178
    %p187 = scmp.eq.s32.totalorder %s18, 1
    %p188 = por %p186, %p187
    %p189 = scmp.ne.s32.totalorder %s178, %s179
    %p190 = scmp.eq.s32.totalorder %s18, 0
    %p191 = por %p189, %p190
    %p192 = scmp.ne.s32.totalorder %s178, %s179
    %p193 = scmp.eq.s32.totalorder %s19, 1
    %p194 = por %p192, %p193
    %p196 = scmp.ne.s32.totalorder %s179, %s195
    %p197 = scmp.eq.s32.totalorder %s19, 0
    %p198 = por %p196, %p197
    %p199 = scmp.le.s32.totalorder 1, %s13
    %p200 = scmp.lt.s32.totalorder %s13, 3
    %p201 = pnand %p199, %p200
    %p202 = pneg %p201
    // Predicated region
    $region9: #{mnist_mlp_forward.1} parent=5 // pred_check
      _
    $region10: #{mnist_mlp_forward.1} parent=5 // pred_check_branch
      %204 = sbr.rel (%p201) target = $region12
    $region11: #{mnist_mlp_forward.1} parent=5 // pred_region
      %s205 = ssub.s32 %s13, 1
      // Predicated region
      $region13: #{mnist_mlp_forward.1} parent=11 // pred_check
        %p206 = pneg %p60
      $region14: #{mnist_mlp_forward.1} parent=11 // pred_check_branch
        %208 = sbr.rel (%p206) target = $region16
      $region15: #{mnist_mlp_forward.1} parent=11 // pred_region
        _
      $region16: #{mnist_mlp_forward.1} parent=11 // pred_fallthru
        _
      // Predicated region
      $region17: #{mnist_mlp_forward.1} parent=11 // pred_check
        %p209 = pneg %p81
      $region18: #{mnist_mlp_forward.1} parent=11 // pred_check_branch
        %211 = sbr.rel (%p209) target = $region20
      $region19: #{mnist_mlp_forward.1} parent=11 // pred_region
        _
      $region20: #{mnist_mlp_forward.1} parent=11 // pred_fallthru
        _
      // Predicated region
      $region21: #{mnist_mlp_forward.1} parent=11 // pred_check
        %p212 = pneg %p102
      $region22: #{mnist_mlp_forward.1} parent=11 // pred_check_branch
        %214 = sbr.rel (%p212) target = $region24
      $region23: #{mnist_mlp_forward.1} parent=11 // pred_region
        _
      $region24: #{mnist_mlp_forward.1} parent=11 // pred_fallthru
        _
      // Predicated region
      $region25: #{mnist_mlp_forward.1} parent=11 // pred_check
        %p215 = pneg %p123
      $region26: #{mnist_mlp_forward.1} parent=11 // pred_check_branch
        %217 = sbr.rel (%p215) target = $region28
      $region27: #{mnist_mlp_forward.1} parent=11 // pred_region
        _
      $region28: #{mnist_mlp_forward.1} parent=11 // pred_fallthru
        _
      // Predicated region
      $region29: #{mnist_mlp_forward.1} parent=11 // pred_check
        %p218 = pneg %p144
      $region30: #{mnist_mlp_forward.1} parent=11 // pred_check_branch
        %220 = sbr.rel (%p218) target = $region32
      $region31: #{mnist_mlp_forward.1} parent=11 // pred_region
        _
      $region32: #{mnist_mlp_forward.1} parent=11 // pred_fallthru
        _
      // Predicated region
      $region33: #{mnist_mlp_forward.1} parent=11 // pred_check
        %p221 = pneg %p165
      $region34: #{mnist_mlp_forward.1} parent=11 // pred_check_branch
        %223 = sbr.rel (%p221) target = $region36
      $region35: #{mnist_mlp_forward.1} parent=11 // pred_region
        _
      $region36: #{mnist_mlp_forward.1} parent=11 // pred_fallthru
        _
    $region12: #{mnist_mlp_forward.1} parent=5 // pred_fallthru
      _
    %p224 = scmp.lt.s32.totalorder %s13, 2
    // Predicated region
    $region37: #{mnist_mlp_forward.1} parent=5 // pred_check
      %p225 = pneg %p224
    $region38: #{mnist_mlp_forward.1} parent=5 // pred_check_branch
      %227 = sbr.rel (%p225) target = $region40
    $region39: #{mnist_mlp_forward.1} parent=5 // pred_region
      // Predicated region
      $region41: #{mnist_mlp_forward.1} parent=39 // pred_check
        %p228 = pneg %p33
      $region42: #{mnist_mlp_forward.1} parent=39 // pred_check_branch
        %230 = sbr.rel (%p228) target = $region44
      $region43: #{mnist_mlp_forward.1} parent=39 // pred_region
        %s231 = smul.u32 2, %s13
        %p232 = scmp.lt.s32.totalorder %s231, 3
        %s233 = scalar_select %p232, %s231, 3
        %s234 = smul.addr %s233, 7
        %s235 = smul.addr %s234, 8
        %s236 = scalar_lea.vmem %s0, %s235
        %s237 = smul.u32 2, %s13
      $region44: #{mnist_mlp_forward.1} parent=39 // pred_fallthru
        _
    $region40: #{mnist_mlp_forward.1} parent=5 // pred_fallthru
      _
    %p238 = scmp.le.s32.totalorder 1, %s13
    %p239 = scmp.lt.s32.totalorder %s13, 3
    %p240 = pnand %p238, %p239
    %p241 = pneg %p240
    // Predicated region
    $region45: #{mnist_mlp_forward.1} parent=5 // pred_check
      _
    $region46: #{mnist_mlp_forward.1} parent=5 // pred_check_branch
      %243 = sbr.rel (%p240) target = $region48
    $region47: #{mnist_mlp_forward.1} parent=5 // pred_region
      %s244 = ssub.s32 %s13, 1
      %s245 = smul.u32 2, %s18
      %p246 = scmp.lt.s32.totalorder %s245, 3
      %s247 = scalar_select %p246, %s245, 3
      %s248 = smul.addr %s247, 7
      %s249 = smul.addr %s248, 8
      %s250 = scalar_lea.vmem %s0, %s249
      %p251 = pneg %p39
      %p252 = pneg %p36
      %p253 = pneg %p60
      %p254 = pneg %p57
      %p255 = pneg %p81
      %p256 = pneg %p78
      %p257 = pneg %p102
      %p258 = pneg %p99
      %p259 = pneg %p123
      %p260 = pneg %p120
      %p261 = pneg %p144
      %p262 = pneg %p141
      %p263 = pneg %p165
      %p264 = pneg %p162
      %p265 = pneg %p191
      %p266 = pneg %p188
      %s267 = smul.u32 2, %s18
      %p268 = scmp.lt.s32.totalorder %s267, 3
      %s269 = scalar_select %p268, %s267, 3
      %s270 = smul.addr %s269, 4
      %s271 = scalar_lea.vmem %s7, %s270
      %s272 = smul.u32 2, %s18
      %p273 = scmp.lt.s32.totalorder %s272, 3
      %s274 = scalar_select %p273, %s272, 3
      %s275 = smul.addr %s274, 7
      %s276 = smul.addr %s275, 8
      %s277 = scalar_lea.vmem %s0, %s276
      %s278 = smul.u32 2, %s18
      %s279 = smul.u32 2, %s18
      %p280 = scmp.lt.s32.totalorder %s279, 3
      %s281 = scalar_select %p280, %s279, 3
      %s282 = smul.addr %s281, 4
      %s283 = scalar_lea.vmem %s7, %s282
      %s284 = smul.u32 2, %s18
      %v286 = vld [vmem:[%s277] sm:$0xff]
      %v287 = vld [vmem:[%s277 + $0x8] sm:$0xff]
      %v288 = vld [vmem:[%s277 + $0x10] sm:$0xff]
      %v289 = vld [vmem:[%s277 + $0x18] sm:$0xff]
      %v290 = vld [vmem:[%s277 + $0x20] sm:$0xff]
      %v291 = vld [vmem:[%s277 + $0x28] sm:$0xff]
      %v292 = vld [vmem:[%s277 + $0x30] sm:$0xff]
      %v293 = vld [vmem:[%s277 + $0x38] sm:$0xff]
      %v294 = vld [vmem:[%s277 + $0x40] sm:$0xff]
      %v295 = vld [vmem:[%s277 + $0x48] sm:$0xff]
      %v296 = vld [vmem:[%s277 + $0x50] sm:$0xff]
      %v297 = vld [vmem:[%s277 + $0x58] sm:$0xff]
      %v298 = vld [vmem:[%s277 + $0x60] sm:$0xff]
      %v299 = vld [vmem:[%s277 + $0x68] sm:$0xff]
      %v300 = vpack.c.bf16 %v293, %v286
      %v301 = vpack.c.bf16 %v294, %v287
      %v302 = vpack.c.bf16 %v295, %v288
      %v303 = vpack.c.bf16 %v296, %v289
      %v304 = vpack.c.bf16 %v297, %v290
      %v305 = vpack.c.bf16 %v298, %v291
      %v306 = vpack.c.bf16 %v299, %v292
      %v307 = vld [vmem:[%s1] sm:$0xf]
      %v308 = vld [vmem:[%s1 + $0x4] sm:$0xf]
      %v309 = vld [vmem:[%s1 + $0x8] sm:$0xf]
      %v310 = vld [vmem:[%s1 + $0xc] sm:$0xf]
      %v311 = vld [vmem:[%s1 + $0x10] sm:$0xf]
      %v312 = vld [vmem:[%s1 + $0x14] sm:$0xf]
      %v313 = vld [vmem:[%s1 + $0x18] sm:$0xf]
      %v314 = vld [vmem:[%s1 + $0x1c] sm:$0xf]
      %v315 = vld [vmem:[%s1 + $0x20] sm:$0xf]
      %v316 = vld [vmem:[%s1 + $0x24] sm:$0xf]
      %v317 = vld [vmem:[%s1 + $0x28] sm:$0xf]
      %v318 = vld [vmem:[%s1 + $0x2c] sm:$0xf]
      %v319 = vld [vmem:[%s1 + $0x30] sm:$0xf]
      %v320 = vld [vmem:[%s1 + $0x34] sm:$0xf]
      %v321 = vld [vmem:[%s1 + $0x38] sm:$0xf]
      %v322 = vld [vmem:[%s1 + $0x3c] sm:$0xf]
      %v323 = vld [vmem:[%s1 + $0x40] sm:$0xf]
      %v324 = vld [vmem:[%s1 + $0x44] sm:$0xf]
      %v325 = vld [vmem:[%s1 + $0x48] sm:$0xf]
      %v326 = vld [vmem:[%s1 + $0x4c] sm:$0xf]
      %v327 = vld [vmem:[%s1 + $0x50] sm:$0xf]
      %v328 = vld [vmem:[%s1 + $0x54] sm:$0xf]
      %v329 = vld [vmem:[%s1 + $0x58] sm:$0xf]
      %v330 = vld [vmem:[%s1 + $0x5c] sm:$0xf]
      %v331 = vld [vmem:[%s1 + $0x60] sm:$0xf]
      %v332 = vld [vmem:[%s1 + $0x64] sm:$0xf]
      %v333 = vld [vmem:[%s1 + $0x68] sm:$0xf]
      %v334 = vld [vmem:[%s1 + $0x6c] sm:$0xf]
      %v335 = vld [vmem:[%s1 + $0x70] sm:$0xf]
      %v336 = vld [vmem:[%s1 + $0x74] sm:$0xf]
      %v337 = vld [vmem:[%s1 + $0x78] sm:$0xf]
      %v338 = vld [vmem:[%s1 + $0x7c] sm:$0xf]
      %v339 = vld [vmem:[%s1 + $0x80] sm:$0xf]
      %v340 = vld [vmem:[%s1 + $0x84] sm:$0xf]
      %v341 = vld [vmem:[%s1 + $0x88] sm:$0xf]
      %v342 = vld [vmem:[%s1 + $0x8c] sm:$0xf]
      %v343 = vld [vmem:[%s1 + $0x90] sm:$0xf]
      %v344 = vld [vmem:[%s1 + $0x94] sm:$0xf]
      %v345 = vld [vmem:[%s1 + $0x98] sm:$0xf]
      %v346 = vld [vmem:[%s1 + $0x9c] sm:$0xf]
      %v347 = vld [vmem:[%s1 + $0xa0] sm:$0xf]
      %v348 = vld [vmem:[%s1 + $0xa4] sm:$0xf]
      %v349 = vld [vmem:[%s1 + $0xa8] sm:$0xf]
      %v350 = vld [vmem:[%s1 + $0xac] sm:$0xf]
      %v351 = vld [vmem:[%s1 + $0xb0] sm:$0xf]
      %v352 = vld [vmem:[%s1 + $0xb4] sm:$0xf]
      %v353 = vld [vmem:[%s1 + $0xb8] sm:$0xf]
      %v354 = vld [vmem:[%s1 + $0xbc] sm:$0xf]
      %v355 = vld [vmem:[%s1 + $0xc0] sm:$0xf]
      %v356 = vld [vmem:[%s1 + $0xc4] sm:$0xf]
      %v357 = vld [vmem:[%s1 + $0xc8] sm:$0xf]
      %v358 = vld [vmem:[%s1 + $0xcc] sm:$0xf]
      %v359 = vld [vmem:[%s1 + $0xd0] sm:$0xf]
      %v360 = vld [vmem:[%s1 + $0xd4] sm:$0xf]
      %v361 = vld [vmem:[%s1 + $0xd8] sm:$0xf]
      %v362 = vld [vmem:[%s1 + $0xdc] sm:$0xf]
      %v363 = vld [vmem:[%s1 + $0xe0] sm:$0xf]
      %v364 = vld [vmem:[%s1 + $0xe4] sm:$0xf]
      %v365 = vld [vmem:[%s1 + $0xe8] sm:$0xf]
      %v366 = vld [vmem:[%s1 + $0xec] sm:$0xf]
      %v367 = vld [vmem:[%s1 + $0xf0] sm:$0xf]
      %v368 = vld [vmem:[%s1 + $0xf4] sm:$0xf]
      %v369 = vld [vmem:[%s1 + $0xf8] sm:$0xf]
      %v370 = vld [vmem:[%s1 + $0xfc] sm:$0xf]
      %v371 = vld [vmem:[%s1 + $0x100] sm:$0xf]
      %v372 = vld [vmem:[%s1 + $0x104] sm:$0xf]
      %v373 = vld [vmem:[%s1 + $0x108] sm:$0xf]
      %v374 = vld [vmem:[%s1 + $0x10c] sm:$0xf]
      %v375 = vld [vmem:[%s1 + $0x110] sm:$0xf]
      %v376 = vld [vmem:[%s1 + $0x114] sm:$0xf]
      %v377 = vld [vmem:[%s1 + $0x118] sm:$0xf]
      %v378 = vld [vmem:[%s1 + $0x11c] sm:$0xf]
      %v379 = vld [vmem:[%s1 + $0x120] sm:$0xf]
      %v380 = vld [vmem:[%s1 + $0x124] sm:$0xf]
      %v381 = vld [vmem:[%s1 + $0x128] sm:$0xf]
      %v382 = vld [vmem:[%s1 + $0x12c] sm:$0xf]
      %v383 = vld [vmem:[%s1 + $0x130] sm:$0xf]
      %v384 = vld [vmem:[%s1 + $0x134] sm:$0xf]
      %v385 = vld [vmem:[%s1 + $0x138] sm:$0xf]
      %v386 = vld [vmem:[%s1 + $0x13c] sm:$0xf]
      %v387 = vld [vmem:[%s1 + $0x140] sm:$0xf]
      %v388 = vld [vmem:[%s1 + $0x144] sm:$0xf]
      %v389 = vld [vmem:[%s1 + $0x148] sm:$0xf]
      %v390 = vld [vmem:[%s1 + $0x14c] sm:$0xf]
      %v391 = vld [vmem:[%s1 + $0x150] sm:$0xf]
      %v392 = vld [vmem:[%s1 + $0x154] sm:$0xf]
      %v393 = vld [vmem:[%s1 + $0x158] sm:$0xf]
      %v394 = vld [vmem:[%s1 + $0x15c] sm:$0xf]
      %v395 = vld [vmem:[%s1 + $0x160] sm:$0xf]
      %v396 = vld [vmem:[%s1 + $0x164] sm:$0xf]
      %v397 = vld [vmem:[%s1 + $0x168] sm:$0xf]
      %v398 = vld [vmem:[%s1 + $0x16c] sm:$0xf]
      %v399 = vld [vmem:[%s1 + $0x170] sm:$0xf]
      %v400 = vld [vmem:[%s1 + $0x174] sm:$0xf]
      %v401 = vld [vmem:[%s1 + $0x178] sm:$0xf]
      %v402 = vld [vmem:[%s1 + $0x17c] sm:$0xf]
      %v403 = vld [vmem:[%s1 + $0x180] sm:$0xf]
      %v404 = vld [vmem:[%s1 + $0x184] sm:$0xf]
      %v405 = vld [vmem:[%s2] sm:$0x1]
      %v407 = vlaneseq
      %v408 = vshrl.u32 %v407, 7
      %v409 = vsub.s32 0, %v408
      %v410 = vrot.slane %v405, %v409
      %v510 = vunpack.c.l.b16 %v307
      %v511 = vunpack.c.l.b16 %v308
      %v512 = vunpack.c.l.b16 %v309
      %v513 = vunpack.c.l.b16 %v310
      %v514 = vunpack.c.l.b16 %v311
      %v515 = vunpack.c.l.b16 %v312
      %v516 = vunpack.c.l.b16 %v313
      %v517 = vunpack.c.l.b16 %v314
      %v518 = vunpack.c.l.b16 %v315
      %v519 = vunpack.c.l.b16 %v316
      %v520 = vunpack.c.l.b16 %v317
      %v521 = vunpack.c.l.b16 %v318
      %v522 = vunpack.c.l.b16 %v319
      %v523 = vunpack.c.l.b16 %v320
      %v524 = vunpack.c.l.b16 %v321
      %v525 = vunpack.c.l.b16 %v322
      %v526 = vunpack.c.l.b16 %v323
      %v527 = vunpack.c.l.b16 %v324
      %v528 = vunpack.c.l.b16 %v325
      %v529 = vunpack.c.l.b16 %v326
      %v530 = vunpack.c.l.b16 %v327
      %v531 = vunpack.c.l.b16 %v328
      %v532 = vunpack.c.l.b16 %v329
      %v533 = vunpack.c.l.b16 %v330
      %v534 = vunpack.c.l.b16 %v331
      %v535 = vunpack.c.l.b16 %v332
      %v536 = vunpack.c.l.b16 %v333
      %v537 = vunpack.c.l.b16 %v334
      %v538 = vunpack.c.l.b16 %v335
      %v539 = vunpack.c.l.b16 %v336
      %v540 = vunpack.c.l.b16 %v337
      %v541 = vunpack.c.l.b16 %v338
      %v542 = vunpack.c.l.b16 %v339
      %v543 = vunpack.c.l.b16 %v340
      %v544 = vunpack.c.l.b16 %v341
      %v545 = vunpack.c.l.b16 %v342
      %v546 = vunpack.c.l.b16 %v343
      %v547 = vunpack.c.l.b16 %v344
      %v548 = vunpack.c.l.b16 %v345
      %v549 = vunpack.c.l.b16 %v346
      %v550 = vunpack.c.l.b16 %v347
      %v551 = vunpack.c.l.b16 %v348
      %v552 = vunpack.c.l.b16 %v349
      %v553 = vunpack.c.l.b16 %v350
      %v554 = vunpack.c.l.b16 %v351
      %v555 = vunpack.c.l.b16 %v352
      %v556 = vunpack.c.l.b16 %v353
      %v557 = vunpack.c.l.b16 %v354
      %v558 = vunpack.c.l.b16 %v355
      %v559 = vunpack.c.l.b16 %v356
      %v560 = vunpack.c.l.b16 %v357
      %v561 = vunpack.c.l.b16 %v358
      %v562 = vunpack.c.l.b16 %v359
      %v563 = vunpack.c.l.b16 %v360
      %v564 = vunpack.c.l.b16 %v361
      %v565 = vunpack.c.l.b16 %v362
      %v566 = vunpack.c.l.b16 %v363
      %v567 = vunpack.c.l.b16 %v364
      %v568 = vunpack.c.l.b16 %v365
      %v569 = vunpack.c.l.b16 %v366
      %v570 = vunpack.c.l.b16 %v367
      %v571 = vunpack.c.l.b16 %v368
      %v572 = vunpack.c.l.b16 %v369
      %v573 = vunpack.c.l.b16 %v370
      %v574 = vunpack.c.l.b16 %v371
      %v575 = vunpack.c.l.b16 %v372
      %v576 = vunpack.c.l.b16 %v373
      %v577 = vunpack.c.l.b16 %v374
      %v578 = vunpack.c.l.b16 %v375
      %v579 = vunpack.c.l.b16 %v376
      %v580 = vunpack.c.l.b16 %v377
      %v581 = vunpack.c.l.b16 %v378
      %v582 = vunpack.c.l.b16 %v379
      %v583 = vunpack.c.l.b16 %v380
      %v584 = vunpack.c.l.b16 %v381
      %v585 = vunpack.c.l.b16 %v382
      %v586 = vunpack.c.l.b16 %v383
      %v587 = vunpack.c.l.b16 %v384
      %v588 = vunpack.c.l.b16 %v385
      %v589 = vunpack.c.l.b16 %v386
      %v590 = vunpack.c.l.b16 %v387
      %v591 = vunpack.c.l.b16 %v388
      %v592 = vunpack.c.l.b16 %v389
      %v593 = vunpack.c.l.b16 %v390
      %v594 = vunpack.c.l.b16 %v391
      %v595 = vunpack.c.l.b16 %v392
      %v596 = vunpack.c.l.b16 %v393
      %v597 = vunpack.c.l.b16 %v394
      %v598 = vunpack.c.l.b16 %v395
      %v599 = vunpack.c.l.b16 %v396
      %v600 = vunpack.c.l.b16 %v397
      %v601 = vunpack.c.l.b16 %v398
      %v602 = vunpack.c.l.b16 %v399
      %v603 = vunpack.c.l.b16 %v400
      %v604 = vunpack.c.l.b16 %v401
      %v605 = vunpack.c.l.b16 %v402
      %v606 = vunpack.c.l.b16 %v403
      %v607 = vunpack.c.l.b16 %v404
      %v608 = vpack.c.b16 %v511, %v510
      %v609 = vpack.c.b16 %v513, %v512
      %v610 = vpack.c.b16 %v515, %v514
      %v611 = vpack.c.b16 %v517, %v516
      %v612 = vpack.c.b16 %v519, %v518
      %v613 = vpack.c.b16 %v521, %v520
      %v614 = vpack.c.b16 %v523, %v522
      %v615 = vpack.c.b16 %v525, %v524
      %v616 = vpack.c.b16 %v527, %v526
      %v617 = vpack.c.b16 %v529, %v528
      %v618 = vpack.c.b16 %v531, %v530
      %v619 = vpack.c.b16 %v533, %v532
      %v620 = vpack.c.b16 %v535, %v534
      %v621 = vpack.c.b16 %v537, %v536
      %v622 = vpack.c.b16 %v539, %v538
      %v623 = vpack.c.b16 %v541, %v540
      %v624 = vpack.c.b16 %v543, %v542
      %v625 = vpack.c.b16 %v545, %v544
      %v626 = vpack.c.b16 %v547, %v546
      %v627 = vpack.c.b16 %v549, %v548
      %v628 = vpack.c.b16 %v551, %v550
      %v629 = vpack.c.b16 %v553, %v552
      %v630 = vpack.c.b16 %v555, %v554
      %v631 = vpack.c.b16 %v557, %v556
      %v632 = vpack.c.b16 %v559, %v558
      %v633 = vpack.c.b16 %v561, %v560
      %v634 = vpack.c.b16 %v563, %v562
      %v635 = vpack.c.b16 %v565, %v564
      %v636 = vpack.c.b16 %v567, %v566
      %v637 = vpack.c.b16 %v569, %v568
      %v638 = vpack.c.b16 %v571, %v570
      %v639 = vpack.c.b16 %v573, %v572
      %v640 = vpack.c.b16 %v575, %v574
      %v641 = vpack.c.b16 %v577, %v576
      %v642 = vpack.c.b16 %v579, %v578
      %v643 = vpack.c.b16 %v581, %v580
      %v644 = vpack.c.b16 %v583, %v582
      %v645 = vpack.c.b16 %v585, %v584
      %v646 = vpack.c.b16 %v587, %v586
      %v647 = vpack.c.b16 %v589, %v588
      %v648 = vpack.c.b16 %v591, %v590
      %v649 = vpack.c.b16 %v593, %v592
      %v650 = vpack.c.b16 %v595, %v594
      %v651 = vpack.c.b16 %v597, %v596
      %v652 = vpack.c.b16 %v599, %v598
      %v653 = vpack.c.b16 %v601, %v600
      %v654 = vpack.c.b16 %v603, %v602
      %v655 = vpack.c.b16 %v605, %v604
      %v656 = vpack.c.b16 %v607, %v606
      %vm706 = vcmask 130048
      %v708 = vsel %vm706, %v306, 0
      %710 = vmatprep.subr.bf16.mxu0 0
      %711 = vmatpush1.bf16.msra.mxu0 %v608
      %712 = vmatprep.subr.bf16.mxu0 0
      %713 = vmatpush1.bf16.msra.mxu0 %v609
      %714 = vmatprep.subr.bf16.mxu0 0
      %715 = vmatpush1.bf16.msra.mxu0 %v610
      %716 = vmatprep.subr.bf16.mxu0 0
      %717 = vmatpush1.bf16.msra.mxu0 %v611
      %718 = vmatprep.subr.bf16.mxu0 0
      %719 = vmatpush1.bf16.msra.mxu0 %v612
      %720 = vmatprep.subr.bf16.mxu0 0
      %721 = vmatpush1.bf16.msra.mxu0 %v613
      %722 = vmatprep.subr.bf16.mxu0 0
      %723 = vmatpush1.bf16.msra.mxu0 %v614
      %724 = vmatprep.subr.bf16.mxu0 0
      %725 = vmatpush1.bf16.msra.mxu0 %v615
      %726 = vmatprep.subr.bf16.mxu0 0
      %727 = vmatpush1.bf16.msra.mxu0 %v616
      %728 = vmatprep.subr.bf16.mxu0 0
      %729 = vmatpush1.bf16.msra.mxu0 %v617
      %730 = vmatprep.subr.bf16.mxu0 0
      %731 = vmatpush1.bf16.msra.mxu0 %v618
      %732 = vmatprep.subr.bf16.mxu0 0
      %733 = vmatpush1.bf16.msra.mxu0 %v619
      %734 = vmatprep.subr.bf16.mxu0 0
      %735 = vmatpush1.bf16.msra.mxu0 %v620
      %736 = vmatprep.subr.bf16.mxu0 0
      %737 = vmatpush1.bf16.msra.mxu0 %v621
      %738 = vmatprep.subr.bf16.mxu0 0
      %739 = vmatpush1.bf16.msra.mxu0 %v622
      %740 = vmatprep.subr.bf16.mxu0 0
      %741 = vmatpush1.bf16.msra.mxu0 %v623
      %742 = vmatprep.mubr.bf16.mxu0 %v301
      %743 = vmatmul.mubr.bf16.gmra.mrb[0].mxu0 %v300
      %v744 = vpop.f32.mrb[0].mxu0
      %v745 = vadd.f32 %v410, %v744
      %v746 = vpop.f32.mrb[0].mxu0
      %v747 = vpop.f32.mrb[0].mxu0
      %v748 = vadd.f32 %v410, %v747
      %v749 = vpop.f32.mrb[0].mxu0
      %750 = vdwg.mxu0
      %751 = vmatprep.subr.bf16.mxu0 0
      %752 = vmatpush1.bf16.msra.mxu0 %v624
      %753 = vmatprep.subr.bf16.mxu0 0
      %754 = vmatpush1.bf16.msra.mxu0 %v625
      %755 = vmatprep.subr.bf16.mxu0 0
      %756 = vmatpush1.bf16.msra.mxu0 %v626
      %757 = vmatprep.subr.bf16.mxu0 0
      %758 = vmatpush1.bf16.msra.mxu0 %v627
      %759 = vmatprep.subr.bf16.mxu0 0
      %760 = vmatpush1.bf16.msra.mxu0 %v628
      %761 = vmatprep.subr.bf16.mxu0 0
      %762 = vmatpush1.bf16.msra.mxu0 %v629
      %763 = vmatprep.subr.bf16.mxu0 0
      %764 = vmatpush1.bf16.msra.mxu0 %v630
      %765 = vmatprep.subr.bf16.mxu0 0
      %766 = vmatpush1.bf16.msra.mxu0 %v631
      %767 = vmatprep.subr.bf16.mxu0 0
      %768 = vmatpush1.bf16.msra.mxu0 %v632
      %769 = vmatprep.subr.bf16.mxu0 0
      %770 = vmatpush1.bf16.msra.mxu0 %v633
      %771 = vmatprep.subr.bf16.mxu0 0
      %772 = vmatpush1.bf16.msra.mxu0 %v634
      %773 = vmatprep.subr.bf16.mxu0 0
      %774 = vmatpush1.bf16.msra.mxu0 %v635
      %775 = vmatprep.subr.bf16.mxu0 0
      %776 = vmatpush1.bf16.msra.mxu0 %v636
      %777 = vmatprep.subr.bf16.mxu0 0
      %778 = vmatpush1.bf16.msra.mxu0 %v637
      %779 = vmatprep.subr.bf16.mxu0 0
      %780 = vmatpush1.bf16.msra.mxu0 %v638
      %781 = vmatprep.subr.bf16.mxu0 0
      %782 = vmatpush1.bf16.msra.mxu0 %v639
      %783 = vmatprep.mubr.bf16.mxu0 %v303
      %784 = vmatmul.mubr.bf16.gmra.mrb[0].mxu0 %v302
      %v785 = vpop.f32.mrb[0].mxu0
      %v786 = vadd.f32 %v745, %v785
      %v787 = vpop.f32.mrb[0].mxu0
      %v788 = vpop.f32.mrb[0].mxu0
      %v789 = vadd.f32 %v748, %v788
      %v790 = vpop.f32.mrb[0].mxu0
      %791 = vdwg.mxu0
      %792 = vmatprep.subr.bf16.mxu0 0
      %793 = vmatpush1.bf16.msra.mxu0 %v640
      %794 = vmatprep.subr.bf16.mxu0 0
      %795 = vmatpush1.bf16.msra.mxu0 %v641
      %796 = vmatprep.subr.bf16.mxu0 0
      %797 = vmatpush1.bf16.msra.mxu0 %v642
      %798 = vmatprep.subr.bf16.mxu0 0
      %799 = vmatpush1.bf16.msra.mxu0 %v643
      %800 = vmatprep.subr.bf16.mxu0 0
      %801 = vmatpush1.bf16.msra.mxu0 %v644
      %802 = vmatprep.subr.bf16.mxu0 0
      %803 = vmatpush1.bf16.msra.mxu0 %v645
      %804 = vmatprep.subr.bf16.mxu0 0
      %805 = vmatpush1.bf16.msra.mxu0 %v646
      %806 = vmatprep.subr.bf16.mxu0 0
      %807 = vmatpush1.bf16.msra.mxu0 %v647
      %808 = vmatprep.subr.bf16.mxu0 0
      %809 = vmatpush1.bf16.msra.mxu0 %v648
      %810 = vmatprep.subr.bf16.mxu0 0
      %811 = vmatpush1.bf16.msra.mxu0 %v649
      %812 = vmatprep.subr.bf16.mxu0 0
      %813 = vmatpush1.bf16.msra.mxu0 %v650
      %814 = vmatprep.subr.bf16.mxu0 0
      %815 = vmatpush1.bf16.msra.mxu0 %v651
      %816 = vmatprep.subr.bf16.mxu0 0
      %817 = vmatpush1.bf16.msra.mxu0 %v652
      %818 = vmatprep.subr.bf16.mxu0 0
      %819 = vmatpush1.bf16.msra.mxu0 %v653
      %820 = vmatprep.subr.bf16.mxu0 0
      %821 = vmatpush1.bf16.msra.mxu0 %v654
      %822 = vmatprep.subr.bf16.mxu0 0
      %823 = vmatpush1.bf16.msra.mxu0 %v655
      %824 = vmatprep.mubr.bf16.mxu0 %v305
      %825 = vmatmul.mubr.bf16.gmra.mrb[0].mxu0 %v304
      %v826 = vpop.f32.mrb[0].mxu0
      %v827 = vadd.f32 %v786, %v826
      %v828 = vpop.f32.mrb[0].mxu0
      %v829 = vpop.f32.mrb[0].mxu0
      %v830 = vadd.f32 %v789, %v829
      %v831 = vpop.f32.mrb[0].mxu0
      %832 = vdwg.mxu0
      %833 = vmatprep.subr.bf16.mxu0 0
      %834 = vmatpush1.bf16.msra.mxu0 %v656
      %835 = vmatprep.subr.bf16.mxu0 0
      %836 = vmatpush1.bf16.msra.mxu0 0
      %837 = vmatprep.subr.bf16.mxu0 0
      %838 = vmatpush1.bf16.msra.mxu0 0
      %839 = vmatprep.subr.bf16.mxu0 0
      %840 = vmatpush1.bf16.msra.mxu0 0
      %841 = vmatprep.subr.bf16.mxu0 0
      %842 = vmatpush1.bf16.msra.mxu0 0
      %843 = vmatprep.subr.bf16.mxu0 0
      %844 = vmatpush1.bf16.msra.mxu0 0
      %845 = vmatprep.subr.bf16.mxu0 0
      %846 = vmatpush1.bf16.msra.mxu0 0
      %847 = vmatprep.subr.bf16.mxu0 0
      %848 = vmatpush1.bf16.msra.mxu0 0
      %849 = vmatprep.subr.bf16.mxu0 0
      %850 = vmatpush1.bf16.msra.mxu0 0
      %851 = vmatprep.subr.bf16.mxu0 0
      %852 = vmatpush1.bf16.msra.mxu0 0
      %853 = vmatprep.subr.bf16.mxu0 0
      %854 = vmatpush1.bf16.msra.mxu0 0
      %855 = vmatprep.subr.bf16.mxu0 0
      %856 = vmatpush1.bf16.msra.mxu0 0
      %857 = vmatprep.subr.bf16.mxu0 0
      %858 = vmatpush1.bf16.msra.mxu0 0
      %859 = vmatprep.subr.bf16.mxu0 0
      %860 = vmatpush1.bf16.msra.mxu0 0
      %861 = vmatprep.subr.bf16.mxu0 0
      %862 = vmatpush1.bf16.msra.mxu0 0
      %863 = vmatprep.subr.bf16.mxu0 0
      %864 = vmatpush1.bf16.msra.mxu0 0
      %865 = vmatprep.mubr.bf16.mxu0 0
      %866 = vmatmul.mubr.bf16.gmra.mrb[0].mxu0 %v708
      %v867 = vpop.f32.mrb[0].mxu0
      %v868 = vadd.f32 %v827, %v867
      %v869 = vpop.f32.mrb[0].mxu0
      %v870 = vpop.f32.mrb[0].mxu0
      %v871 = vadd.f32 %v830, %v870
      %v872 = vpop.f32.mrb[0].mxu0
      %873 = vdwg.mxu0
      %v874 = vmax.f32 %v868, 0.0
      %v875 = vmax.f32 %v871, 0.0
      %v876 = vpack.c.bf16 %v875, %v874
      %v877 = vld [vmem:[%s3] sm:$0xf]
      %v878 = vld [vmem:[%s3 + $0x4] sm:$0xf]
      %v879 = vld [vmem:[%s3 + $0x8] sm:$0xf]
      %v880 = vld [vmem:[%s3 + $0xc] sm:$0xf]
      %v881 = vld [vmem:[%s3 + $0x10] sm:$0xf]
      %v882 = vld [vmem:[%s3 + $0x14] sm:$0xf]
      %v883 = vld [vmem:[%s3 + $0x18] sm:$0xf]
      %v884 = vld [vmem:[%s3 + $0x1c] sm:$0xf]
      %v885 = vld [vmem:[%s3 + $0x20] sm:$0xf]
      %v886 = vld [vmem:[%s3 + $0x24] sm:$0xf]
      %v887 = vld [vmem:[%s3 + $0x28] sm:$0xf]
      %v888 = vld [vmem:[%s3 + $0x2c] sm:$0xf]
      %v889 = vld [vmem:[%s3 + $0x30] sm:$0xf]
      %v890 = vld [vmem:[%s3 + $0x34] sm:$0xf]
      %v891 = vld [vmem:[%s3 + $0x38] sm:$0xf]
      %v892 = vld [vmem:[%s3 + $0x3c] sm:$0xf]
      %v893 = vld [vmem:[%s4] sm:$0x1]
      %v895 = vlaneseq
      %v896 = vshrl.u32 %v895, 7
      %v897 = vsub.s32 0, %v896
      %v898 = vrot.slane %v893, %v897
      %v916 = vunpack.c.l.b16 %v877
      %v917 = vunpack.c.l.b16 %v878
      %v918 = vunpack.c.l.b16 %v879
      %v919 = vunpack.c.l.b16 %v880
      %v920 = vunpack.c.l.b16 %v881
      %v921 = vunpack.c.l.b16 %v882
      %v922 = vunpack.c.l.b16 %v883
      %v923 = vunpack.c.l.b16 %v884
      %v924 = vunpack.c.l.b16 %v885
      %v925 = vunpack.c.l.b16 %v886
      %v926 = vunpack.c.l.b16 %v887
      %v927 = vunpack.c.l.b16 %v888
      %v928 = vunpack.c.l.b16 %v889
      %v929 = vunpack.c.l.b16 %v890
      %v930 = vunpack.c.l.b16 %v891
      %v931 = vunpack.c.l.b16 %v892
      %v932 = vpack.c.b16 %v917, %v916
      %v933 = vpack.c.b16 %v919, %v918
      %v934 = vpack.c.b16 %v921, %v920
      %v935 = vpack.c.b16 %v923, %v922
      %v936 = vpack.c.b16 %v925, %v924
      %v937 = vpack.c.b16 %v927, %v926
      %v938 = vpack.c.b16 %v929, %v928
      %v939 = vpack.c.b16 %v931, %v930
      %948 = vmatprep.subr.bf16.mxu0 0
      %949 = vmatpush1.bf16.msra.mxu0 %v932
      %950 = vmatprep.subr.bf16.mxu0 0
      %951 = vmatpush1.bf16.msra.mxu0 %v933
      %952 = vmatprep.subr.bf16.mxu0 0
      %953 = vmatpush1.bf16.msra.mxu0 %v934
      %954 = vmatprep.subr.bf16.mxu0 0
      %955 = vmatpush1.bf16.msra.mxu0 %v935
      %956 = vmatprep.subr.bf16.mxu0 0
      %957 = vmatpush1.bf16.msra.mxu0 %v936
      %958 = vmatprep.subr.bf16.mxu0 0
      %959 = vmatpush1.bf16.msra.mxu0 %v937
      %960 = vmatprep.subr.bf16.mxu0 0
      %961 = vmatpush1.bf16.msra.mxu0 %v938
      %962 = vmatprep.subr.bf16.mxu0 0
      %963 = vmatpush1.bf16.msra.mxu0 %v939
      %964 = vmatprep.subr.bf16.mxu0 0
      %965 = vmatpush1.bf16.msra.mxu0 0
      %966 = vmatprep.subr.bf16.mxu0 0
      %967 = vmatpush1.bf16.msra.mxu0 0
      %968 = vmatprep.subr.bf16.mxu0 0
      %969 = vmatpush1.bf16.msra.mxu0 0
      %970 = vmatprep.subr.bf16.mxu0 0
      %971 = vmatpush1.bf16.msra.mxu0 0
      %972 = vmatprep.subr.bf16.mxu0 0
      %973 = vmatpush1.bf16.msra.mxu0 0
      %974 = vmatprep.subr.bf16.mxu0 0
      %975 = vmatpush1.bf16.msra.mxu0 0
      %976 = vmatprep.subr.bf16.mxu0 0
      %977 = vmatpush1.bf16.msra.mxu0 0
      %978 = vmatprep.subr.bf16.mxu0 0
      %979 = vmatpush1.bf16.msra.mxu0 0
      %980 = vmatprep.mubr.bf16.mxu0 0
      %981 = vmatmul.mubr.bf16.gmra.mrb[0].mxu0 %v876
      %v982 = vpop.f32.mrb[0].mxu0
      %v983 = vadd.f32 %v898, %v982
      %v984 = vpop.f32.mrb[0].mxu0
      %v985 = vpop.f32.mrb[0].mxu0
      %v986 = vadd.f32 %v898, %v985
      %v987 = vpop.f32.mrb[0].mxu0
      %988 = vdwg.mxu0
      %v989 = vmax.f32 %v983, 0.0
      %v990 = vmax.f32 %v986, 0.0
      %v991 = vpack.c.bf16 %v990, %v989
      %v992 = vld [vmem:[%s5] sm:$0xf]
      %v993 = vld [vmem:[%s5 + $0x4] sm:$0xf]
      %v994 = vld [vmem:[%s5 + $0x8] sm:$0xf]
      %v995 = vld [vmem:[%s5 + $0xc] sm:$0xf]
      %v996 = vld [vmem:[%s5 + $0x10] sm:$0xf]
      %v997 = vld [vmem:[%s5 + $0x14] sm:$0xf]
      %v998 = vld [vmem:[%s5 + $0x18] sm:$0xf]
      %v999 = vld [vmem:[%s5 + $0x1c] sm:$0xf]
      %v1000 = vld [vmem:[%s5 + $0x20] sm:$0xf]
      %v1001 = vld [vmem:[%s5 + $0x24] sm:$0xf]
      %v1002 = vld [vmem:[%s5 + $0x28] sm:$0xf]
      %v1003 = vld [vmem:[%s5 + $0x2c] sm:$0xf]
      %v1004 = vld [vmem:[%s5 + $0x30] sm:$0xf]
      %v1005 = vld [vmem:[%s5 + $0x34] sm:$0xf]
      %v1006 = vld [vmem:[%s5 + $0x38] sm:$0xf]
      %v1007 = vld [vmem:[%s5 + $0x3c] sm:$0xf]
      %v1008 = vld [vmem:[%s6] sm:$0x1]
      %v1010 = vlaneseq
      %v1011 = vshrl.u32 %v1010, 7
      %v1012 = vsub.s32 0, %v1011
      %v1013 = vrot.slane %v1008, %v1012
      %v1031 = vunpack.c.l.b16 %v992
      %v1032 = vunpack.c.l.b16 %v993
      %v1033 = vunpack.c.l.b16 %v994
      %v1034 = vunpack.c.l.b16 %v995
      %v1035 = vunpack.c.l.b16 %v996
      %v1036 = vunpack.c.l.b16 %v997
      %v1037 = vunpack.c.l.b16 %v998
      %v1038 = vunpack.c.l.b16 %v999
      %v1039 = vunpack.c.l.b16 %v1000
      %v1040 = vunpack.c.l.b16 %v1001
      %v1041 = vunpack.c.l.b16 %v1002
      %v1042 = vunpack.c.l.b16 %v1003
      %v1043 = vunpack.c.l.b16 %v1004
      %v1044 = vunpack.c.l.b16 %v1005
      %v1045 = vunpack.c.l.b16 %v1006
      %v1046 = vunpack.c.l.b16 %v1007
      %v1047 = vpack.c.b16 %v1032, %v1031
      %v1048 = vpack.c.b16 %v1034, %v1033
      %v1049 = vpack.c.b16 %v1036, %v1035
      %v1050 = vpack.c.b16 %v1038, %v1037
      %v1051 = vpack.c.b16 %v1040, %v1039
      %v1052 = vpack.c.b16 %v1042, %v1041
      %v1053 = vpack.c.b16 %v1044, %v1043
      %v1054 = vpack.c.b16 %v1046, %v1045
      %1063 = vmatprep.subr.bf16.mxu0 0
      %1064 = vmatpush1.bf16.msra.mxu0 %v1047
      %1065 = vmatprep.subr.bf16.mxu0 0
      %1066 = vmatpush1.bf16.msra.mxu0 %v1048
      %1067 = vmatprep.subr.bf16.mxu0 0
      %1068 = vmatpush1.bf16.msra.mxu0 %v1049
      %1069 = vmatprep.subr.bf16.mxu0 0
      %1070 = vmatpush1.bf16.msra.mxu0 %v1050
      %1071 = vmatprep.subr.bf16.mxu0 0
      %1072 = vmatpush1.bf16.msra.mxu0 %v1051
      %1073 = vmatprep.subr.bf16.mxu0 0
      %1074 = vmatpush1.bf16.msra.mxu0 %v1052
      %1075 = vmatprep.subr.bf16.mxu0 0
      %1076 = vmatpush1.bf16.msra.mxu0 %v1053
      %1077 = vmatprep.subr.bf16.mxu0 0
      %1078 = vmatpush1.bf16.msra.mxu0 %v1054
      %1079 = vmatprep.subr.bf16.mxu0 0
      %1080 = vmatpush1.bf16.msra.mxu0 0
      %1081 = vmatprep.subr.bf16.mxu0 0
      %1082 = vmatpush1.bf16.msra.mxu0 0
      %1083 = vmatprep.subr.bf16.mxu0 0
      %1084 = vmatpush1.bf16.msra.mxu0 0
      %1085 = vmatprep.subr.bf16.mxu0 0
      %1086 = vmatpush1.bf16.msra.mxu0 0
      %1087 = vmatprep.subr.bf16.mxu0 0
      %1088 = vmatpush1.bf16.msra.mxu0 0
      %1089 = vmatprep.subr.bf16.mxu0 0
      %1090 = vmatpush1.bf16.msra.mxu0 0
      %1091 = vmatprep.subr.bf16.mxu0 0
      %1092 = vmatpush1.bf16.msra.mxu0 0
      %1093 = vmatprep.subr.bf16.mxu0 0
      %1094 = vmatpush1.bf16.msra.mxu0 0
      %1095 = vmatprep.mubr.bf16.mxu0 0
      %1096 = vmatmul.mubr.bf16.gmra.mrb[0].mxu0 %v991
      %v1097 = vpop.f32.mrb[0].mxu0
      %v1098 = vadd.f32 %v1013, %v1097
      %v1099 = vpop.f32.mrb[0].mxu0
      %v1100 = vpop.f32.mrb[0].mxu0
      %v1101 = vadd.f32 %v1013, %v1100
      %v1102 = vpop.f32.mrb[0].mxu0
      %1103 = vdwg.mxu0
      %v1104 = vpack.c.bf16 %v1101, %v1098
      %v1106 = vunpack.c.l.b16 %v1104
      %v1107 = vunpack.c.h.b16 %v1104
      %v1108 = vpack.c.b16 %v1106, %v1106
      %v1109 = vpack.c.b16 %v1107, %v1107
      %1112 = vst [vmem:[%s283] sm:$0xf] %v1108
      %1113 = vst [vmem:[%s283 + $0x4] sm:$0xf] %v1109
      %s1114 = smul.u32 2, %s18
      %p1115 = scmp.lt.s32.totalorder %s1114, 3
      %s1116 = scalar_select %p1115, %s1114, 3
      %s1117 = smul.addr %s1116, 4
      %s1118 = scalar_lea.vmem %s7, %s1117
      // Predicated region
      $region49: #{mnist_mlp_forward.1} parent=47 // pred_check
        %p1119 = pneg %p188
      $region50: #{mnist_mlp_forward.1} parent=47 // pred_check_branch
        %1121 = sbr.rel (%p1119) target = $region52
      $region51: #{mnist_mlp_forward.1} parent=47 // pred_region
        %s1122 = smul.u32 2, %s18
      $region52: #{mnist_mlp_forward.1} parent=47 // pred_fallthru
        _
    $region48: #{mnist_mlp_forward.1} parent=5 // pred_fallthru
      _
    %p1123 = scmp.le.s32.totalorder 2, %s13
    // Predicated region
    $region53: #{mnist_mlp_forward.1} parent=5 // pred_check
      %p1124 = pneg %p1123
    $region54: #{mnist_mlp_forward.1} parent=5 // pred_check_branch
      %1126 = sbr.rel (%p1124) target = $region56
    $region55: #{mnist_mlp_forward.1} parent=5 // pred_region
      %s1127 = ssub.s32 %s13, 2
      // Predicated region
      $region57: #{mnist_mlp_forward.1} parent=55 // pred_check
        %p1128 = pneg %p194
      $region58: #{mnist_mlp_forward.1} parent=55 // pred_check_branch
        %1130 = sbr.rel (%p1128) target = $region60
      $region59: #{mnist_mlp_forward.1} parent=55 // pred_region
        %s1131 = smul.u32 2, %s19
        %p1132 = scmp.lt.s32.totalorder %s1131, 3
        %s1133 = scalar_select %p1132, %s1131, 3
        %s1134 = smul.addr %s1133, 4
        %s1135 = scalar_lea.vmem %s7, %s1134
      $region60: #{mnist_mlp_forward.1} parent=55 // pred_fallthru
        _
    $region56: #{mnist_mlp_forward.1} parent=5 // pred_fallthru
      _
  $region6: #{mnist_mlp_forward.1} parent=0 // loop_footer
    %s17 = sadd.s32 1, %s13
  $region7: #{mnist_mlp_forward.1} parent=0 // loop_footer_branch
    %12 = sbr.rel target = $region3
  $region8: #{mnist_mlp_forward.1} parent=0 // loop_exit
    _

</llo_original>
